<compile_context>
chip_gen: v6e
topology: v6e:2x2x1
jax: 0.10.0
libtpu: 0.0.40
codegen_flags: <defaults>
</compile_context>

<pallas_src>
import functools

import jax
import jax.numpy as jnp
import numpy as np
from jax.experimental import pallas as pl
from jax.experimental.pallas import tpu as pltpu


def _round_up(x, m):
    return ((x + m - 1) // m) * m


def _cdiv(a, b):
    return -(-a // b)


def _image_rep_kernel(h_ref, w_ref, b_ref, o_ref, acc_ref, *, seq_len, ts):
    """Fused: sum over seq tiles -> linear(768 -> E_pad) -> L2 normalize rows.

    h_ref:   (tb, ts, 768)  input dtype (e.g. bf16)   hidden-state tile
    w_ref:   (768, E_pad)   f32                       weight.T / S (mean folded in)
    b_ref:   (1, E_pad)     f32                       bias (zero-padded)
    o_ref:   (tb, E_pad)    f32                       normalized embedding tile
    acc_ref: (tb, 768)      f32 VMEM scratch          running sum over S
    """
    k = pl.program_id(1)

    @pl.when(k == 0)
    def _init():
        acc_ref[...] = jnp.zeros_like(acc_ref)

    full_tiles = seq_len // ts  # static Python ints -> trace-time branching

    if seq_len % ts == 0:
        # Every sequence tile is full; cast fused into the f32 reduction.
        acc_ref[...] += jnp.sum(h_ref[...], axis=1, dtype=jnp.float32)
    else:
        rem = seq_len - full_tiles * ts  # rows valid in the (single) tail tile

        @pl.when(k < full_tiles)
        def _full():
            acc_ref[...] += jnp.sum(h_ref[...], axis=1, dtype=jnp.float32)

        @pl.when(k == full_tiles)
        def _tail():
            # Out-of-bounds rows of the last seq tile hold unspecified data;
            # mask them with a fully static iota mask before reducing.
            h = h_ref[...]
            row = jax.lax.broadcasted_iota(jnp.int32, h.shape, 1)
            h = jnp.where(row < rem, h, jnp.zeros_like(h))
            acc_ref[...] += jnp.sum(h, axis=1, dtype=jnp.float32)

    @pl.when(k == pl.num_programs(1) - 1)
    def _finish():
        pooled = acc_ref[...]                                   # (tb, 768) f32 sum
        # 1/S is folded into w_ref, so this is mean @ W.T + b.  Keep f32 on the
        # MXU: this runs once per batch tile and is negligible vs streaming.
        y = jnp.dot(pooled, w_ref[...],
                    preferred_element_type=jnp.float32)         # (tb, E_pad)
        y = y + b_ref[...]
        # F.normalize(y, p=2, dim=1, eps=1e-12): y * rsqrt(max(ssq, eps^2)).
        # Padded E columns contribute exactly 0 to ssq (zero weight cols +
        # zero bias).  Garbage rows from a partial batch tile are row-local
        # and get discarded by Pallas on the out-of-bounds store.
        ssq = jnp.sum(y * y, axis=1, keepdims=True)
        o_ref[...] = (y * jax.lax.rsqrt(jnp.maximum(ssq, 1e-24))).astype(o_ref.dtype)


@functools.partial(jax.jit, static_argnames=("tb", "ts", "vmem_limit"))
def _image_rep_forward_impl(last_hidden_state, weight, bias, *, tb, ts, vmem_limit):
    B, S, D = last_hidden_state.shape
    E = weight.shape[0]

    # --- parameter prep (fused into this jit dispatch) ----------------------
    E_pad = _round_up(E, 128)  # lane-dense output: unmasked vst, no 256 pad needed
    w_t = weight.T.astype(jnp.float32) / jnp.float32(S)         # fold 1/S into W
    w_pad = jnp.zeros((D, E_pad), jnp.float32).at[:, :E].set(w_t)
    b_pad = jnp.zeros((1, E_pad), jnp.float32).at[0, :E].set(bias.astype(jnp.float32))

    nb = _cdiv(B, tb)
    ns = _cdiv(S, ts)

    in_bytes = last_hidden_state.dtype.itemsize
    cost = pl.CostEstimate(
        flops=int(B * S * D + 2 * B * D * E_pad),
        transcendentals=int(B),
        bytes_accessed=int(B * S * D * in_bytes + D * E_pad * 4 + B * E_pad * 4),
    )

    kernel = functools.partial(_image_rep_kernel, seq_len=S, ts=ts)

    out = pl.pallas_call(
        kernel,
        out_shape=jax.ShapeDtypeStruct((B, E_pad), jnp.float32),
        grid_spec=pltpu.PrefetchScalarGridSpec(
            num_scalar_prefetch=0,
            grid=(nb, ns),                       # (batch tiles, seq-reduction tiles)
            in_specs=[
                # Streamed hidden state (default double-buffered).
                pl.BlockSpec((tb, ts, D), lambda i, k: (i, k, 0)),
                # Resident constants: single buffer, constant index_map.
                pl.BlockSpec((D, E_pad), lambda i, k: (0, 0),
                             pipeline_mode=pl.Buffered(1)),
                pl.BlockSpec((1, E_pad), lambda i, k: (0, 0),
                             pipeline_mode=pl.Buffered(1)),
            ],
            out_specs=pl.BlockSpec((tb, E_pad), lambda i, k: (i, 0)),
            scratch_shapes=[pltpu.VMEM((tb, D), jnp.float32)],   # f32 accumulator
        ),
        compiler_params=pltpu.CompilerParams(
            dimension_semantics=("parallel", "arbitrary"),
            vmem_limit_bytes=int(vmem_limit),
        ),
        cost_estimate=cost,
    )(last_hidden_state, w_pad, b_pad)

    return out[:, :E]


def image_rep_extractor_forward(last_hidden_state, weight, bias, *, tb=None, ts=None):
    """Fused mean-pool + Linear(768, E) + L2-normalize.

    last_hidden_state: (B, S, 768)  any float dtype (bf16 recommended)
    weight:            (E, 768)     torch nn.Linear layout
    bias:              (E,)
    returns:           (B, E) float32, rows L2-normalized
    """
    B, S, D = last_hidden_state.shape
    E = weight.shape[0]
    assert weight.shape == (E, D) and bias.shape == (E,)
    itemsize = int(np.dtype(last_hidden_state.dtype).itemsize)

    # --- per-generation VMEM sizing -----------------------------------------
    vmem_cap = 64 * 1024 * 1024          # conservative fallback (v7x per-TC)
    try:
        vmem_cap = int(pltpu.get_tpu_info().vmem_capacity_bytes)
    except Exception:
        pass
    # v7x (64 MiB) -> 48 MiB scoped limit; v5e/v6e (128 MiB) -> 100 MiB.
    vmem_limit = int(min(max(vmem_cap - 16 * 1024 * 1024, 32 * 1024 * 1024),
                         100 * 1024 * 1024))

    # --- tiling ---------------------------------------------------------------
    # tb: batch rows per tile.  Aim for >= 2 batch tiles so the "parallel" axis
    # actually feeds both v7x TensorCores; multiples of 8 keep the f32 output
    # block legal; tiny B uses a full-extent block.
    if tb is None:
        if B <= 8:
            tb = B
        else:
            tb = min(128, _round_up(_cdiv(B, 2), 8))
    # ts: sequence rows per tile.  Prefer the full extent (legal for any S, no
    # padding, single reduction step); otherwise tile in multiples of 32 sized
    # so a double-buffered input tile stays well within the scoped VMEM limit.
    if ts is None:
        per_buffer_budget = vmem_limit // 4
        max_rows = max(32, per_buffer_budget // max(1, tb * D * itemsize))
        ts = S if S <= max_rows else (max_rows // 32) * 32

    return _image_rep_forward_impl(last_hidden_state, weight, bias,
                                   tb=int(tb), ts=int(ts), vmem_limit=vmem_limit)


def _reference(last_hidden_state, weight, bias):
    """Pure-JAX reference matching the PyTorch forward."""
    pooled = jnp.mean(last_hidden_state, axis=1)
    y = pooled @ weight.T + bias
    norm = jnp.sqrt(jnp.sum(y * y, axis=1, keepdims=True))
    return y / jnp.maximum(norm, 1e-12)


if __name__ == "__main__":
    # Small shapes consistent with the module's forward:
    #   ViT hidden size D = 768 (fixed by Linear(768, embed_size)),
    #   short synthetic sequence S = 8, batch B = 2, embed_size E = 32.
    B, S, D, E = 2, 8, 768, 32

    key = jax.random.PRNGKey(0)
    k_h, k_w, k_b = jax.random.split(key, 3)

    # Synthetic backbone output (stands in for net(**inputs).last_hidden_state),
    # kept in bf16 — the kernel streams it without any wrapper-side cast/pad.
    last_hidden_state = jax.random.normal(k_h, (B, S, D),
                                          dtype=jnp.float32).astype(jnp.bfloat16)

    # Deterministic init of the module's own parameters (nn.Linear(768, E)).
    bound = 1.0 / np.sqrt(D)
    weight = jax.random.uniform(k_w, (E, D), minval=-bound, maxval=bound,
                                dtype=jnp.float32)
    bias = jax.random.uniform(k_b, (E,), minval=-bound, maxval=bound,
                              dtype=jnp.float32)

    out = image_rep_extractor_forward(last_hidden_state, weight, bias)
    out = jax.block_until_ready(out)

    # Reference sees the same bf16-quantized hidden state, upcast to f32.
    ref = jax.block_until_ready(
        _reference(last_hidden_state.astype(jnp.float32), weight, bias))
    np.testing.assert_allclose(np.asarray(out), np.asarray(ref),
                               rtol=1e-4, atol=1e-5)
    assert out.shape == (B, E)

    print("KERNEL_OK")
</pallas_src>

<mosaic_0001>
module attributes {stable_mosaic.version = 11 : i64} {
  func.func @_image_rep_kernel(%arg0: i32, %arg1: i32, %arg2: memref<2x8x768xbf16, #tpu.memory_space<vmem>>, %arg3: memref<768x128xf32, #tpu.memory_space<vmem>>, %arg4: memref<1x128xf32, #tpu.memory_space<vmem>>, %arg5: memref<2x128xf32, #tpu.memory_space<vmem>>, %arg6: memref<2x768xf32, #tpu.memory_space<vmem>>) attributes {dimension_semantics = [#tpu.dimension_semantics<parallel>, #tpu.dimension_semantics<arbitrary>], iteration_bounds = array<i64: 1, 1>, scalar_prefetch = 0 : i64, scratch_operands = 1 : i64, tpu.core_type = #tpu.core_type<tc>, window_params = [{transform_indices = @transform_0, window_bounds = array<i64: 2, 8, 768>}, {pipeline_mode = #tpu.pipeline_mode<synchronous>, transform_indices = @transform_1, window_bounds = array<i64: 768, 128>}, {pipeline_mode = #tpu.pipeline_mode<synchronous>, transform_indices = @transform_2, window_bounds = array<i64: 1, 128>}, {transform_indices = @transform_3, window_bounds = array<i64: 2, 128>}]} {
    %c0_i32 = arith.constant 0 : i32
    %0 = arith.cmpi eq, %arg1, %c0_i32 : i32
    %1 = arith.extui %0 : i1 to i32
    %c0_i32_0 = arith.constant 0 : i32
    %2 = arith.cmpi ne, %1, %c0_i32_0 : i32
    scf.if %2 {
      %cst_9 = arith.constant 0.000000e+00 : f32
      %12 = vector.broadcast %cst_9 : f32 to vector<2x768xf32>
      %c0_10 = arith.constant 0 : index
      %c0_11 = arith.constant 0 : index
      %13 = vector.load %arg6[%c0_10, %c0_11] : memref<2x768xf32, #tpu.memory_space<vmem>>, vector<2x768xf32>
      tpu.vector_store %arg6[%c0_10, %c0_11], %12 {strides = array<i32>} : memref<2x768xf32, #tpu.memory_space<vmem>>, vector<2x768xf32>,
    } else {
    }
    %c0 = arith.constant 0 : index
    %c0_1 = arith.constant 0 : index
    %3 = vector.load %arg6[%c0, %c0_1] : memref<2x768xf32, #tpu.memory_space<vmem>>, vector<2x768xf32>
    %c0_2 = arith.constant 0 : index
    %c0_3 = arith.constant 0 : index
    %c0_4 = arith.constant 0 : index
    %4 = vector.load %arg2[%c0_2, %c0_3, %c0_4] : memref<2x8x768xbf16, #tpu.memory_space<vmem>>, vector<2x8x768xbf16>
    %5 = arith.extf %4 : vector<2x8x768xbf16> to vector<2x8x768xf32>
    %cst = arith.constant dense<0.000000e+00> : vector<2x768xf32>
    %6 = vector.multi_reduction <add>, %5, %cst [1] : vector<2x8x768xf32> to vector<2x768xf32>
    %7 = arith.addf %3, %6 : vector<2x768xf32>
    %c0_5 = arith.constant 0 : index
    %c0_6 = arith.constant 0 : index
    %8 = vector.load %arg6[%c0_5, %c0_6] : memref<2x768xf32, #tpu.memory_space<vmem>>, vector<2x768xf32>
    tpu.vector_store %arg6[%c0_5, %c0_6], %7 {strides = array<i32>} : memref<2x768xf32, #tpu.memory_space<vmem>>, vector<2x768xf32>,
    %c0_i32_7 = arith.constant 0 : i32
    %9 = arith.cmpi eq, %arg1, %c0_i32_7 : i32
    %10 = arith.extui %9 : i1 to i32
    %c0_i32_8 = arith.constant 0 : i32
    %11 = arith.cmpi ne, %10, %c0_i32_8 : i32
    scf.if %11 {
      %c0_9 = arith.constant 0 : index
      %c0_10 = arith.constant 0 : index
      %12 = vector.load %arg6[%c0_9, %c0_10] : memref<2x768xf32, #tpu.memory_space<vmem>>, vector<2x768xf32>
      %c0_11 = arith.constant 0 : index
      %c0_12 = arith.constant 0 : index
      %13 = vector.load %arg3[%c0_11, %c0_12] : memref<768x128xf32, #tpu.memory_space<vmem>>, vector<768x128xf32>
      %cst_13 = arith.constant dense<0.000000e+00> : vector<2x128xf32>
      %14 = tpu.matmul %12, %13, %cst_13 {dimension_numbers = #tpu.dot_dimension_numbers<[1], [0], [0], [1], [0, 0, 1, 1], [], []>} : vector<2x768xf32>, vector<768x128xf32>, vector<2x128xf32> -> vector<2x128xf32>
      %c0_14 = arith.constant 0 : index
      %c0_15 = arith.constant 0 : index
      %15 = vector.load %arg4[%c0_14, %c0_15] : memref<1x128xf32, #tpu.memory_space<vmem>>, vector<1x128xf32>
      %16 = vector.broadcast %15 : vector<1x128xf32> to vector<2x128xf32>
      %17 = arith.addf %14, %16 : vector<2x128xf32>
      %18 = arith.mulf %17, %17 : vector<2x128xf32>
      %cst_16 = arith.constant dense<0.000000e+00> : vector<2xf32>
      %19 = vector.multi_reduction <add>, %18, %cst_16 [1] : vector<2x128xf32> to vector<2xf32>
      %20 = vector.shape_cast %19 : vector<2xf32> to vector<2x1xf32>
      %cst_17 = arith.constant 1.000000e-24 : f32
      %21 = vector.broadcast %cst_17 : f32 to vector<2x1xf32>
      %22 = arith.maximumf %20, %21 : vector<2x1xf32>
      %23 = math.rsqrt %22 : vector<2x1xf32>
      %24 = vector.broadcast %23 : vector<2x1xf32> to vector<2x128xf32>
      %25 = arith.mulf %17, %24 : vector<2x128xf32>
      %c0_18 = arith.constant 0 : index
      %c0_19 = arith.constant 0 : index
      %26 = vector.load %arg5[%c0_18, %c0_19] : memref<2x128xf32, #tpu.memory_space<vmem>>, vector<2x128xf32>
      tpu.vector_store %arg5[%c0_18, %c0_19], %25 {strides = array<i32>} : memref<2x128xf32, #tpu.memory_space<vmem>>, vector<2x128xf32>,
    } else {
    }
    return
  }
  func.func @transform_0(%arg0: i32, %arg1: i32) -> (i32, i32, i32) {
    %c0_i32 = arith.constant 0 : i32
    %c0_i32_0 = arith.constant 0 : i32
    return %arg0, %arg1, %c0_i32 : i32, i32, i32
  }
  func.func @transform_1(%arg0: i32, %arg1: i32) -> (i32, i32) {
    %c0_i32 = arith.constant 0 : i32
    %c0_i32_0 = arith.constant 0 : i32
    %c0_i32_1 = arith.constant 0 : i32
    return %c0_i32, %c0_i32_0 : i32, i32
  }
  func.func @transform_2(%arg0: i32, %arg1: i32) -> (i32, i32) {
    %c0_i32 = arith.constant 0 : i32
    %c0_i32_0 = arith.constant 0 : i32
    %c0_i32_1 = arith.constant 0 : i32
    return %c0_i32, %c0_i32_0 : i32, i32
  }
  func.func @transform_3(%arg0: i32, %arg1: i32) -> (i32, i32) {
    %c0_i32 = arith.constant 0 : i32
    %c0_i32_0 = arith.constant 0 : i32
    return %arg0, %c0_i32 : i32, i32
  }
}

</mosaic_0001>

<llo_original>
// kernel: _image_rep_forward_impl.1
$region0: #{_image_rep_forward_impl.1}
  #allocation0 [shape = 'u32[]', space=smem, size = 0x4, offset = 0x4, fixed_abs, tag = 'smem constant byte address 0x4 - core index']
  #allocation1 [shape = 'u32[144,128]{1,0:T(1,128)}', space=vmem, size = 0x12000, scoped, tag = 'internal scratch']
  #allocation2 [shape = 'f32[2,768]{1,0:T(2,128)}', space=vmem, size = 0x1800, scoped, tag = 'scratch operand']
  %s0 = inlined_call_operand.vmem [shape: bf16[2,8,768], index: 0, kind: input, shape index: {}]
  %s1 = inlined_call_operand.vmem [shape: f32[768,128], index: 1, kind: input, shape index: {}]
  %s2 = inlined_call_operand.vmem [shape: f32[1,128], index: 2, kind: input, shape index: {}]
  %s3 = inlined_call_operand.hbm [shape: f32[2,128], index: 3, kind: output, shape index: {}]
  %s4 = sld [smem:[#allocation0]]
  $region30: #{_image_rep_forward_impl.1} parent=0
    _
  %s6 = ssub.s32 1, %s4
  %s7 = scalar_select 0, %s6, %s4
  $region1: #{_image_rep_forward_impl.1} parent=0
    #allocation3 [shape = 'u8[1024]{0}', space=vmem, size = 0x400, scoped, tag = 'output window, operand 0, single buffered']
    #allocation4 [shape = 's32[1]{0}', space=sflag, size = 0x4, scoped, tag = 'scoped memory for _image_rep_forward_impl.1']
    %8 = vsyncpa [#allocation4], 0
    // Predicated region
    $region2: #{_image_rep_forward_impl.1} parent=1 // pred_check
      _
    $region3: #{_image_rep_forward_impl.1} parent=1 // pred_check_branch
      %10 = sbr.rel (0) target = $region5
    $region4: #{_image_rep_forward_impl.1} parent=1 // pred_region
      _
    $region5: #{_image_rep_forward_impl.1} parent=1 // pred_fallthru
      _
    // Predicated region
    $region6: #{_image_rep_forward_impl.1} parent=1 // pred_check
      _
    $region7: #{_image_rep_forward_impl.1} parent=1 // pred_check_branch
      %12 = sbr.rel (0) target = $region9
    $region8: #{_image_rep_forward_impl.1} parent=1 // pred_region
      _
    $region9: #{_image_rep_forward_impl.1} parent=1 // pred_fallthru
      _
    // Predicated region
    $region10: #{_image_rep_forward_impl.1} parent=1 // pred_check
      _
    $region11: #{_image_rep_forward_impl.1} parent=1 // pred_check_branch
      %14 = sbr.rel (0) target = $region13
    $region12: #{_image_rep_forward_impl.1} parent=1 // pred_region
      _
    $region13: #{_image_rep_forward_impl.1} parent=1 // pred_fallthru
      _
    %p15 = scmp.eq.s32.totalorder 0, 0
    // Predicated region
    $region14: #{_image_rep_forward_impl.1} parent=1 // pred_check
      %p16 = pneg %p15
    $region15: #{_image_rep_forward_impl.1} parent=1 // pred_check_branch
      %18 = sbr.rel (%p16) target = $region17
    $region16: #{_image_rep_forward_impl.1} parent=1 // pred_region
      %19 = vst [vmem:[#allocation2] sm:$0xff] 0.0
      %20 = vst [vmem:[#allocation2 + $0x8] sm:$0xf] 0.0
    $region17: #{_image_rep_forward_impl.1} parent=1 // pred_fallthru
      _
    %v21 = vld [vmem:[#allocation2] sm:$0xff]
    %v22 = vld [vmem:[#allocation2 + $0x8] sm:$0xf]
    %v23 = vld [vmem:[%s0] sm:$0xff]
    %v24 = vld [vmem:[%s0 + $0x8] sm:$0xff]
    %v25 = vld [vmem:[%s0 + $0x10] sm:$0xff]
    %v26 = vld [vmem:[%s0 + $0x18] sm:$0xff]
    %v27 = vld [vmem:[%s0 + $0x20] sm:$0xff]
    %v28 = vld [vmem:[%s0 + $0x28] sm:$0xff]
    %v29 = vunpack.c.l.bf16 %v23
    %v30 = vunpack.c.h.bf16 %v23
    %v31 = vunpack.c.l.bf16 %v24
    %v32 = vunpack.c.h.bf16 %v24
    %v33 = vunpack.c.l.bf16 %v25
    %v34 = vunpack.c.h.bf16 %v25
    %v35 = vunpack.c.l.bf16 %v26
    %v36 = vunpack.c.h.bf16 %v26
    %v37 = vunpack.c.l.bf16 %v27
    %v38 = vunpack.c.h.bf16 %v27
    %v39 = vunpack.c.l.bf16 %v28
    %v40 = vunpack.c.h.bf16 %v28
    %v41 = vrot.slane %v29, 4
    %v42 = vadd.f32 %v29, %v41
    %v43 = vrot.slane %v42, 2
    %v44 = vadd.f32 %v42, %v43
    %v45 = vrot.slane %v44, 1
    %v46 = vadd.f32 %v44, %v45
    %v47 = vrot.slane %v30, 4
    %v48 = vadd.f32 %v30, %v47
    %v49 = vrot.slane %v48, 2
    %v50 = vadd.f32 %v48, %v49
    %v51 = vrot.slane %v50, 1
    %v52 = vadd.f32 %v50, %v51
    %v53 = vrot.slane %v31, 4
    %v54 = vadd.f32 %v31, %v53
    %v55 = vrot.slane %v54, 2
    %v56 = vadd.f32 %v54, %v55
    %v57 = vrot.slane %v56, 1
    %v58 = vadd.f32 %v56, %v57
    %v59 = vrot.slane %v32, 4
    %v60 = vadd.f32 %v32, %v59
    %v61 = vrot.slane %v60, 2
    %v62 = vadd.f32 %v60, %v61
    %v63 = vrot.slane %v62, 1
    %v64 = vadd.f32 %v62, %v63
    %v65 = vrot.slane %v33, 4
    %v66 = vadd.f32 %v33, %v65
    %v67 = vrot.slane %v66, 2
    %v68 = vadd.f32 %v66, %v67
    %v69 = vrot.slane %v68, 1
    %v70 = vadd.f32 %v68, %v69
    %v71 = vrot.slane %v34, 4
    %v72 = vadd.f32 %v34, %v71
    %v73 = vrot.slane %v72, 2
    %v74 = vadd.f32 %v72, %v73
    %v75 = vrot.slane %v74, 1
    %v76 = vadd.f32 %v74, %v75
    %v77 = vrot.slane %v35, 4
    %v78 = vadd.f32 %v35, %v77
    %v79 = vrot.slane %v78, 2
    %v80 = vadd.f32 %v78, %v79
    %v81 = vrot.slane %v80, 1
    %v82 = vadd.f32 %v80, %v81
    %v83 = vrot.slane %v36, 4
    %v84 = vadd.f32 %v36, %v83
    %v85 = vrot.slane %v84, 2
    %v86 = vadd.f32 %v84, %v85
    %v87 = vrot.slane %v86, 1
    %v88 = vadd.f32 %v86, %v87
    %v89 = vrot.slane %v37, 4
    %v90 = vadd.f32 %v37, %v89
    %v91 = vrot.slane %v90, 2
    %v92 = vadd.f32 %v90, %v91
    %v93 = vrot.slane %v92, 1
    %v94 = vadd.f32 %v92, %v93
    %v95 = vrot.slane %v38, 4
    %v96 = vadd.f32 %v38, %v95
    %v97 = vrot.slane %v96, 2
    %v98 = vadd.f32 %v96, %v97
    %v99 = vrot.slane %v98, 1
    %v100 = vadd.f32 %v98, %v99
    %v101 = vrot.slane %v39, 4
    %v102 = vadd.f32 %v39, %v101
    %v103 = vrot.slane %v102, 2
    %v104 = vadd.f32 %v102, %v103
    %v105 = vrot.slane %v104, 1
    %v106 = vadd.f32 %v104, %v105
    %v107 = vrot.slane %v40, 4
    %v108 = vadd.f32 %v40, %v107
    %v109 = vrot.slane %v108, 2
    %v110 = vadd.f32 %v108, %v109
    %v111 = vrot.slane %v110, 1
    %v112 = vadd.f32 %v110, %v111
    %v125 = vcombine.low %v46, %v52
    %v126 = vcombine.low %v58, %v64
    %v128 = vunpack.c.l.s4 1983009808
    %v129 = vunpack.c.0.s8 %v128
    %v130 = vlaneseq
    %v131 = vshrl.u32 %v130, 7
    %v132 = vsub.s32 %v129, %v131
    %v133 = vrot.slane %v125, %v132
    %v135 = vunpack.c.l.s4 1983009808
    %v136 = vunpack.c.0.s8 %v135
    %v137 = vlaneseq
    %v138 = vshrl.u32 %v137, 7
    %v139 = vsub.s32 %v136, %v138
    %v140 = vrot.slane %v126, %v139
    %v141 = vcombine.low %v133, %v140
    %v142 = vcombine.low %v70, %v76
    %v144 = vunpack.c.l.s4 1983009808
    %v145 = vunpack.c.0.s8 %v144
    %v146 = vlaneseq
    %v147 = vshrl.u32 %v146, 7
    %v148 = vsub.s32 %v145, %v147
    %v149 = vrot.slane %v142, %v148
    %v150 = vcombine.low %v82, %v88
    %v151 = vcombine.low %v94, %v100
    %v153 = vunpack.c.l.s4 1983009808
    %v154 = vunpack.c.0.s8 %v153
    %v155 = vlaneseq
    %v156 = vshrl.u32 %v155, 7
    %v157 = vsub.s32 %v154, %v156
    %v158 = vrot.slane %v150, %v157
    %v160 = vunpack.c.l.s4 1983009808
    %v161 = vunpack.c.0.s8 %v160
    %v162 = vlaneseq
    %v163 = vshrl.u32 %v162, 7
    %v164 = vsub.s32 %v161, %v163
    %v165 = vrot.slane %v151, %v164
    %v166 = vcombine.low %v158, %v165
    %v167 = vcombine.low %v106, %v112
    %v169 = vunpack.c.l.s4 1983009808
    %v170 = vunpack.c.0.s8 %v169
    %v171 = vlaneseq
    %v172 = vshrl.u32 %v171, 7
    %v173 = vsub.s32 %v170, %v172
    %v174 = vrot.slane %v167, %v173
    %vm175 = vcmask 1044484
    %v176 = vsel %vm175, %v141, %v141
    %vm177 = vcmask 1046534
    %v178 = vsel %vm177, %v141, %v176
    %v179 = vrot.slane %v166, 7
    %vm180 = vcmask 1041409
    %v181 = vsel %vm180, %v179, %v178
    %vm182 = vcmask 1043459
    %v183 = vsel %vm182, %v179, %v181
    %vm184 = vcmask 1045509
    %v185 = vsel %vm184, %v179, %v183
    %vm186 = vcmask 1047559
    %v187 = vsel %vm186, %v179, %v185
    %v188 = vsel %vm175, %v149, %v149
    %v189 = vsel %vm177, %v149, %v188
    %v190 = vrot.slane %v174, 7
    %v191 = vsel %vm180, %v190, %v189
    %v192 = vsel %vm182, %v190, %v191
    %v193 = vsel %vm184, %v190, %v192
    %v194 = vsel %vm186, %v190, %v193
    %v197 = vadd.f32 %v21, %v187
    %v198 = vadd.f32 %v22, %v194
    %199 = vst [vmem:[#allocation2] sm:$0xff] %v197
    %200 = vst [vmem:[#allocation2 + $0x8] sm:$0xf] %v198
    // Predicated region
    $region18: #{_image_rep_forward_impl.1} parent=1 // pred_check
      %p201 = pneg %p15
    $region19: #{_image_rep_forward_impl.1} parent=1 // pred_check_branch
      %203 = sbr.rel (%p201) target = $region21
    $region20: #{_image_rep_forward_impl.1} parent=1 // pred_region
      %v204 = vld [vmem:[#allocation2] sm:$0xff]
      %v205 = vld [vmem:[#allocation2 + $0x8] sm:$0xf]
      %v206 = vld [vmem:[%s1] sm:$0xff]
      %v207 = vld [vmem:[%s1 + $0x8] sm:$0xff]
      %v208 = vld [vmem:[%s1 + $0x10] sm:$0xff]
      %v209 = vld [vmem:[%s1 + $0x18] sm:$0xff]
      %v210 = vld [vmem:[%s1 + $0x20] sm:$0xff]
      %v211 = vld [vmem:[%s1 + $0x28] sm:$0xff]
      %v212 = vld [vmem:[%s1 + $0x30] sm:$0xff]
      %v213 = vld [vmem:[%s1 + $0x38] sm:$0xff]
      %v214 = vld [vmem:[%s1 + $0x40] sm:$0xff]
      %v215 = vld [vmem:[%s1 + $0x48] sm:$0xff]
      %v216 = vld [vmem:[%s1 + $0x50] sm:$0xff]
      %v217 = vld [vmem:[%s1 + $0x58] sm:$0xff]
      %v218 = vld [vmem:[%s1 + $0x60] sm:$0xff]
      %v219 = vld [vmem:[%s1 + $0x68] sm:$0xff]
      %v220 = vld [vmem:[%s1 + $0x70] sm:$0xff]
      %v221 = vld [vmem:[%s1 + $0x78] sm:$0xff]
      %v222 = vld [vmem:[%s1 + $0x80] sm:$0xff]
      %v223 = vld [vmem:[%s1 + $0x88] sm:$0xff]
      %v224 = vld [vmem:[%s1 + $0x90] sm:$0xff]
      %v225 = vld [vmem:[%s1 + $0x98] sm:$0xff]
      %v226 = vld [vmem:[%s1 + $0xa0] sm:$0xff]
      %v227 = vld [vmem:[%s1 + $0xa8] sm:$0xff]
      %v228 = vld [vmem:[%s1 + $0xb0] sm:$0xff]
      %v229 = vld [vmem:[%s1 + $0xb8] sm:$0xff]
      %v230 = vld [vmem:[%s1 + $0xc0] sm:$0xff]
      %v231 = vld [vmem:[%s1 + $0xc8] sm:$0xff]
      %v232 = vld [vmem:[%s1 + $0xd0] sm:$0xff]
      %v233 = vld [vmem:[%s1 + $0xd8] sm:$0xff]
      %v234 = vld [vmem:[%s1 + $0xe0] sm:$0xff]
      %v235 = vld [vmem:[%s1 + $0xe8] sm:$0xff]
      %v236 = vld [vmem:[%s1 + $0xf0] sm:$0xff]
      %v237 = vld [vmem:[%s1 + $0xf8] sm:$0xff]
      %v238 = vld [vmem:[%s1 + $0x100] sm:$0xff]
      %v239 = vld [vmem:[%s1 + $0x108] sm:$0xff]
      %v240 = vld [vmem:[%s1 + $0x110] sm:$0xff]
      %v241 = vld [vmem:[%s1 + $0x118] sm:$0xff]
      %v242 = vld [vmem:[%s1 + $0x120] sm:$0xff]
      %v243 = vld [vmem:[%s1 + $0x128] sm:$0xff]
      %v244 = vld [vmem:[%s1 + $0x130] sm:$0xff]
      %v245 = vld [vmem:[%s1 + $0x138] sm:$0xff]
      %v246 = vld [vmem:[%s1 + $0x140] sm:$0xff]
      %v247 = vld [vmem:[%s1 + $0x148] sm:$0xff]
      %v248 = vld [vmem:[%s1 + $0x150] sm:$0xff]
      %v249 = vld [vmem:[%s1 + $0x158] sm:$0xff]
      %v250 = vld [vmem:[%s1 + $0x160] sm:$0xff]
      %v251 = vld [vmem:[%s1 + $0x168] sm:$0xff]
      %v252 = vld [vmem:[%s1 + $0x170] sm:$0xff]
      %v253 = vld [vmem:[%s1 + $0x178] sm:$0xff]
      %v254 = vld [vmem:[%s1 + $0x180] sm:$0xff]
      %v255 = vld [vmem:[%s1 + $0x188] sm:$0xff]
      %v256 = vld [vmem:[%s1 + $0x190] sm:$0xff]
      %v257 = vld [vmem:[%s1 + $0x198] sm:$0xff]
      %v258 = vld [vmem:[%s1 + $0x1a0] sm:$0xff]
      %v259 = vld [vmem:[%s1 + $0x1a8] sm:$0xff]
      %v260 = vld [vmem:[%s1 + $0x1b0] sm:$0xff]
      %v261 = vld [vmem:[%s1 + $0x1b8] sm:$0xff]
      %v262 = vld [vmem:[%s1 + $0x1c0] sm:$0xff]
      %v263 = vld [vmem:[%s1 + $0x1c8] sm:$0xff]
      %v264 = vld [vmem:[%s1 + $0x1d0] sm:$0xff]
      %v265 = vld [vmem:[%s1 + $0x1d8] sm:$0xff]
      %v266 = vld [vmem:[%s1 + $0x1e0] sm:$0xff]
      %v267 = vld [vmem:[%s1 + $0x1e8] sm:$0xff]
      %v268 = vld [vmem:[%s1 + $0x1f0] sm:$0xff]
      %v269 = vld [vmem:[%s1 + $0x1f8] sm:$0xff]
      %v270 = vld [vmem:[%s1 + $0x200] sm:$0xff]
      %v271 = vld [vmem:[%s1 + $0x208] sm:$0xff]
      %v272 = vld [vmem:[%s1 + $0x210] sm:$0xff]
      %v273 = vld [vmem:[%s1 + $0x218] sm:$0xff]
      %v274 = vld [vmem:[%s1 + $0x220] sm:$0xff]
      %v275 = vld [vmem:[%s1 + $0x228] sm:$0xff]
      %v276 = vld [vmem:[%s1 + $0x230] sm:$0xff]
      %v277 = vld [vmem:[%s1 + $0x238] sm:$0xff]
      %v278 = vld [vmem:[%s1 + $0x240] sm:$0xff]
      %v279 = vld [vmem:[%s1 + $0x248] sm:$0xff]
      %v280 = vld [vmem:[%s1 + $0x250] sm:$0xff]
      %v281 = vld [vmem:[%s1 + $0x258] sm:$0xff]
      %v282 = vld [vmem:[%s1 + $0x260] sm:$0xff]
      %v283 = vld [vmem:[%s1 + $0x268] sm:$0xff]
      %v284 = vld [vmem:[%s1 + $0x270] sm:$0xff]
      %v285 = vld [vmem:[%s1 + $0x278] sm:$0xff]
      %v286 = vld [vmem:[%s1 + $0x280] sm:$0xff]
      %v287 = vld [vmem:[%s1 + $0x288] sm:$0xff]
      %v288 = vld [vmem:[%s1 + $0x290] sm:$0xff]
      %v289 = vld [vmem:[%s1 + $0x298] sm:$0xff]
      %v290 = vld [vmem:[%s1 + $0x2a0] sm:$0xff]
      %v291 = vld [vmem:[%s1 + $0x2a8] sm:$0xff]
      %v292 = vld [vmem:[%s1 + $0x2b0] sm:$0xff]
      %v293 = vld [vmem:[%s1 + $0x2b8] sm:$0xff]
      %v294 = vld [vmem:[%s1 + $0x2c0] sm:$0xff]
      %v295 = vld [vmem:[%s1 + $0x2c8] sm:$0xff]
      %v296 = vld [vmem:[%s1 + $0x2d0] sm:$0xff]
      %v297 = vld [vmem:[%s1 + $0x2d8] sm:$0xff]
      %v298 = vld [vmem:[%s1 + $0x2e0] sm:$0xff]
      %v299 = vld [vmem:[%s1 + $0x2e8] sm:$0xff]
      %v300 = vld [vmem:[%s1 + $0x2f0] sm:$0xff]
      %v301 = vld [vmem:[%s1 + $0x2f8] sm:$0xff]
      %v302 = vld [vmem:[%s2] sm:$0x1]
      %v304 = vlaneseq
      %v305 = vshrl.u32 %v304, 7
      %v306 = vsub.s32 0, %v305
      %v307 = vrot.slane %v302, %v306
      %v311 = vcombine.high %v204, %v204
      %v313 = vunpack.c.l.s4 1983009808
      %v314 = vunpack.c.0.s8 %v313
      %v315 = vlaneseq
      %v316 = vshrl.u32 %v315, 7
      %v317 = vsub.s32 %v314, %v316
      %v318 = vrot.slane %v204, %v317
      %v320 = vunpack.c.l.s4 1983009808
      %v321 = vunpack.c.0.s8 %v320
      %v322 = vlaneseq
      %v323 = vshrl.u32 %v322, 7
      %v324 = vsub.s32 %v321, %v323
      %v325 = vrot.slane %v311, %v324
      %v326 = vcombine.high %v318, %v318
      %v327 = vcombine.high %v325, %v325
      %v329 = vunpack.c.l.s4 1983009808
      %v330 = vunpack.c.0.s8 %v329
      %v331 = vlaneseq
      %v332 = vshrl.u32 %v331, 7
      %v333 = vsub.s32 %v330, %v332
      %v334 = vrot.slane %v205, %v333
      %v335 = vcombine.high %v334, %v334
      %342 = vmatprep.subr.mxu0 0.0
      %343 = vmatpush1.msra.mxu0 %v221
      %344 = vmatprep.subr.mxu0 0.0
      %345 = vmatpush1.msra.mxu0 %v220
      %346 = vmatprep.subr.mxu0 0.0
      %347 = vmatpush1.msra.mxu0 %v219
      %348 = vmatprep.subr.mxu0 0.0
      %349 = vmatpush1.msra.mxu0 %v218
      %350 = vmatprep.subr.mxu0 0.0
      %351 = vmatpush1.msra.mxu0 %v217
      %352 = vmatprep.subr.mxu0 0.0
      %353 = vmatpush1.msra.mxu0 %v216
      %354 = vmatprep.subr.mxu0 0.0
      %355 = vmatpush1.msra.mxu0 %v215
      %356 = vmatprep.subr.mxu0 0.0
      %357 = vmatpush1.msra.mxu0 %v214
      %358 = vmatprep.subr.mxu0 0.0
      %359 = vmatpush1.msra.mxu0 %v213
      %360 = vmatprep.subr.mxu0 0.0
      %361 = vmatpush1.msra.mxu0 %v212
      %362 = vmatprep.subr.mxu0 0.0
      %363 = vmatpush1.msra.mxu0 %v211
      %364 = vmatprep.subr.mxu0 0.0
      %365 = vmatpush1.msra.mxu0 %v210
      %366 = vmatprep.subr.mxu0 0.0
      %367 = vmatpush1.msra.mxu0 %v209
      %368 = vmatprep.subr.mxu0 0.0
      %369 = vmatpush1.msra.mxu0 %v208
      %370 = vmatprep.subr.mxu0 0.0
      %371 = vmatpush1.msra.mxu0 %v207
      %372 = vmatprep.subr.mxu0 0.0
      %373 = vmatpush1.msra.mxu0 %v206
      %374 = vmatprep.subr.mxu0 0.0
      %375 = vmatpush2.msra.mxu0 %v237
      %376 = vmatprep.subr.mxu0 0.0
      %377 = vmatpush2.msra.mxu0 %v236
      %378 = vmatprep.subr.mxu0 0.0
      %379 = vmatpush2.msra.mxu0 %v235
      %380 = vmatprep.subr.mxu0 0.0
      %381 = vmatpush2.msra.mxu0 %v234
      %382 = vmatprep.subr.mxu0 0.0
      %383 = vmatpush2.msra.mxu0 %v233
      %384 = vmatprep.subr.mxu0 0.0
      %385 = vmatpush2.msra.mxu0 %v232
      %386 = vmatprep.subr.mxu0 0.0
      %387 = vmatpush2.msra.mxu0 %v231
      %388 = vmatprep.subr.mxu0 0.0
      %389 = vmatpush2.msra.mxu0 %v230
      %390 = vmatprep.subr.mxu0 0.0
      %391 = vmatpush2.msra.mxu0 %v229
      %392 = vmatprep.subr.mxu0 0.0
      %393 = vmatpush2.msra.mxu0 %v228
      %394 = vmatprep.subr.mxu0 0.0
      %395 = vmatpush2.msra.mxu0 %v227
      %396 = vmatprep.subr.mxu0 0.0
      %397 = vmatpush2.msra.mxu0 %v226
      %398 = vmatprep.subr.mxu0 0.0
      %399 = vmatpush2.msra.mxu0 %v225
      %400 = vmatprep.subr.mxu0 0.0
      %401 = vmatpush2.msra.mxu0 %v224
      %402 = vmatprep.subr.mxu0 0.0
      %403 = vmatpush2.msra.mxu0 %v223
      %404 = vmatprep.subr.mxu0 0.0
      %405 = vmatpush2.msra.mxu0 %v222
      %406 = vmatprep.mubr.f32.mxu0 %v326
      %407 = vmatmul.mubr.f32.gmra.mxu0 %v318
      %v408 = vpop.f32.mrf.mxu0
      %v409 = vadd.f32 %v307, %v408
      %v410 = vpop.f32.mrf.mxu0
      %411 = vdwg.mxu0
      %412 = vmatprep.subr.mxu0 0.0
      %413 = vmatpush1.msra.mxu0 %v253
      %414 = vmatprep.subr.mxu0 0.0
      %415 = vmatpush1.msra.mxu0 %v252
      %416 = vmatprep.subr.mxu0 0.0
      %417 = vmatpush1.msra.mxu0 %v251
      %418 = vmatprep.subr.mxu0 0.0
      %419 = vmatpush1.msra.mxu0 %v250
      %420 = vmatprep.subr.mxu0 0.0
      %421 = vmatpush1.msra.mxu0 %v249
      %422 = vmatprep.subr.mxu0 0.0
      %423 = vmatpush1.msra.mxu0 %v248
      %424 = vmatprep.subr.mxu0 0.0
      %425 = vmatpush1.msra.mxu0 %v247
      %426 = vmatprep.subr.mxu0 0.0
      %427 = vmatpush1.msra.mxu0 %v246
      %428 = vmatprep.subr.mxu0 0.0
      %429 = vmatpush1.msra.mxu0 %v245
      %430 = vmatprep.subr.mxu0 0.0
      %431 = vmatpush1.msra.mxu0 %v244
      %432 = vmatprep.subr.mxu0 0.0
      %433 = vmatpush1.msra.mxu0 %v243
      %434 = vmatprep.subr.mxu0 0.0
      %435 = vmatpush1.msra.mxu0 %v242
      %436 = vmatprep.subr.mxu0 0.0
      %437 = vmatpush1.msra.mxu0 %v241
      %438 = vmatprep.subr.mxu0 0.0
      %439 = vmatpush1.msra.mxu0 %v240
      %440 = vmatprep.subr.mxu0 0.0
      %441 = vmatpush1.msra.mxu0 %v239
      %442 = vmatprep.subr.mxu0 0.0
      %443 = vmatpush1.msra.mxu0 %v238
      %444 = vmatprep.subr.mxu0 0.0
      %445 = vmatpush2.msra.mxu0 %v269
      %446 = vmatprep.subr.mxu0 0.0
      %447 = vmatpush2.msra.mxu0 %v268
      %448 = vmatprep.subr.mxu0 0.0
      %449 = vmatpush2.msra.mxu0 %v267
      %450 = vmatprep.subr.mxu0 0.0
      %451 = vmatpush2.msra.mxu0 %v266
      %452 = vmatprep.subr.mxu0 0.0
      %453 = vmatpush2.msra.mxu0 %v265
      %454 = vmatprep.subr.mxu0 0.0
      %455 = vmatpush2.msra.mxu0 %v264
      %456 = vmatprep.subr.mxu0 0.0
      %457 = vmatpush2.msra.mxu0 %v263
      %458 = vmatprep.subr.mxu0 0.0
      %459 = vmatpush2.msra.mxu0 %v262
      %460 = vmatprep.subr.mxu0 0.0
      %461 = vmatpush2.msra.mxu0 %v261
      %462 = vmatprep.subr.mxu0 0.0
      %463 = vmatpush2.msra.mxu0 %v260
      %464 = vmatprep.subr.mxu0 0.0
      %465 = vmatpush2.msra.mxu0 %v259
      %466 = vmatprep.subr.mxu0 0.0
      %467 = vmatpush2.msra.mxu0 %v258
      %468 = vmatprep.subr.mxu0 0.0
      %469 = vmatpush2.msra.mxu0 %v257
      %470 = vmatprep.subr.mxu0 0.0
      %471 = vmatpush2.msra.mxu0 %v256
      %472 = vmatprep.subr.mxu0 0.0
      %473 = vmatpush2.msra.mxu0 %v255
      %474 = vmatprep.subr.mxu0 0.0
      %475 = vmatpush2.msra.mxu0 %v254
      %476 = vmatprep.mubr.f32.mxu0 %v327
      %477 = vmatmul.mubr.f32.gmra.mxu0 %v325
      %v478 = vpop.f32.mrf.mxu0
      %v479 = vadd.f32 %v409, %v478
      %v480 = vpop.f32.mrf.mxu0
      %481 = vdwg.mxu0
      %482 = vmatprep.subr.mxu0 0.0
      %483 = vmatpush1.msra.mxu0 %v285
      %484 = vmatprep.subr.mxu0 0.0
      %485 = vmatpush1.msra.mxu0 %v284
      %486 = vmatprep.subr.mxu0 0.0
      %487 = vmatpush1.msra.mxu0 %v283
      %488 = vmatprep.subr.mxu0 0.0
      %489 = vmatpush1.msra.mxu0 %v282
      %490 = vmatprep.subr.mxu0 0.0
      %491 = vmatpush1.msra.mxu0 %v281
      %492 = vmatprep.subr.mxu0 0.0
      %493 = vmatpush1.msra.mxu0 %v280
      %494 = vmatprep.subr.mxu0 0.0
      %495 = vmatpush1.msra.mxu0 %v279
      %496 = vmatprep.subr.mxu0 0.0
      %497 = vmatpush1.msra.mxu0 %v278
      %498 = vmatprep.subr.mxu0 0.0
      %499 = vmatpush1.msra.mxu0 %v277
      %500 = vmatprep.subr.mxu0 0.0
      %501 = vmatpush1.msra.mxu0 %v276
      %502 = vmatprep.subr.mxu0 0.0
      %503 = vmatpush1.msra.mxu0 %v275
      %504 = vmatprep.subr.mxu0 0.0
      %505 = vmatpush1.msra.mxu0 %v274
      %506 = vmatprep.subr.mxu0 0.0
      %507 = vmatpush1.msra.mxu0 %v273
      %508 = vmatprep.subr.mxu0 0.0
      %509 = vmatpush1.msra.mxu0 %v272
      %510 = vmatprep.subr.mxu0 0.0
      %511 = vmatpush1.msra.mxu0 %v271
      %512 = vmatprep.subr.mxu0 0.0
      %513 = vmatpush1.msra.mxu0 %v270
      %514 = vmatprep.subr.mxu0 0.0
      %515 = vmatpush2.msra.mxu0 %v301
      %516 = vmatprep.subr.mxu0 0.0
      %517 = vmatpush2.msra.mxu0 %v300
      %518 = vmatprep.subr.mxu0 0.0
      %519 = vmatpush2.msra.mxu0 %v299
      %520 = vmatprep.subr.mxu0 0.0
      %521 = vmatpush2.msra.mxu0 %v298
      %522 = vmatprep.subr.mxu0 0.0
      %523 = vmatpush2.msra.mxu0 %v297
      %524 = vmatprep.subr.mxu0 0.0
      %525 = vmatpush2.msra.mxu0 %v296
      %526 = vmatprep.subr.mxu0 0.0
      %527 = vmatpush2.msra.mxu0 %v295
      %528 = vmatprep.subr.mxu0 0.0
      %529 = vmatpush2.msra.mxu0 %v294
      %530 = vmatprep.subr.mxu0 0.0
      %531 = vmatpush2.msra.mxu0 %v293
      %532 = vmatprep.subr.mxu0 0.0
      %533 = vmatpush2.msra.mxu0 %v292
      %534 = vmatprep.subr.mxu0 0.0
      %535 = vmatpush2.msra.mxu0 %v291
      %536 = vmatprep.subr.mxu0 0.0
      %537 = vmatpush2.msra.mxu0 %v290
      %538 = vmatprep.subr.mxu0 0.0
      %539 = vmatpush2.msra.mxu0 %v289
      %540 = vmatprep.subr.mxu0 0.0
      %541 = vmatpush2.msra.mxu0 %v288
      %542 = vmatprep.subr.mxu0 0.0
      %543 = vmatpush2.msra.mxu0 %v287
      %544 = vmatprep.subr.mxu0 0.0
      %545 = vmatpush2.msra.mxu0 %v286
      %546 = vmatprep.mubr.f32.mxu0 %v335
      %547 = vmatmul.mubr.f32.gmra.mxu0 %v334
      %v548 = vpop.f32.mrf.mxu0
      %v549 = vadd.f32 %v479, %v548
      %v550 = vpop.f32.mrf.mxu0
      %551 = vdwg.mxu0
      %v552 = vmul.f32 %v549, %v549
      %vm553 = vcmask 1041408
      %v554 = vsel %vm553, %v552, 0.0
      %555 = vadd.xlane.f32.xlu0 %v554
      %v556 = vpop.xlane.xlu0 %555
      %v557 = vmax.f32 %v556, 1e-24
      %v558 = vrsqrt.pop %v557
      %v559 = vmul.f32 %v549, %v558
      %560 = vst [vmem:[#allocation3] sm:$0x3] %v559
    $region21: #{_image_rep_forward_impl.1} parent=1 // pred_fallthru
      _
    // Predicated region
    $region22: #{_image_rep_forward_impl.1} parent=1 // pred_check
      _
    $region23: #{_image_rep_forward_impl.1} parent=1 // pred_check_branch
      %562 = sbr.rel (0) target = $region25
    $region24: #{_image_rep_forward_impl.1} parent=1 // pred_region
      %s564 = ssub.s32 32, 32
      %565 = vsyncadd [#allocation4], %s564
      %s567 = sshll.u32 [#allocation3], 4
      %s568 = int_to_ptr.vmem [resolvable:$true] %s567
      %570 = dma.vmem_to_hbm [thread:$0]  %s568, 32, %s3, [#allocation4]
    $region25: #{_image_rep_forward_impl.1} parent=1 // pred_fallthru
      _
    // Predicated region
    $region26: #{_image_rep_forward_impl.1} parent=1 // pred_check
      _
    $region27: #{_image_rep_forward_impl.1} parent=1 // pred_check_branch
      %572 = sbr.rel (0) target = $region29
    $region28: #{_image_rep_forward_impl.1} parent=1 // pred_region
      %573 = dma.done [#allocation4], 32
    $region29: #{_image_rep_forward_impl.1} parent=1 // pred_fallthru
      _
    %574 = vsyncpa [#allocation4], 1

</llo_original>
